<compile_context>
chip_gen: v5e
topology: v5e:2x2
jax: 0.10.0
libtpu: 0.0.40
codegen_flags: <defaults>
</compile_context>

<pallas_src>
import functools
import math

import numpy as np
import jax
import jax.numpy as jnp
from jax import lax
from jax.experimental import pallas as pl
from jax.experimental.pallas import tpu as pltpu


def _conv_rowmats(w, w_in: int, pad: int):
    """Expand (Cout, Cin, k, k) conv weights into per-row-tap matmul slabs.

    Returns mat of shape (k, w_in*Cin, w_out*Cout) with
        mat[dy, xin*Cin + c, x*Cout + m] = w[m, c, dy, dx],  xin = x + dx - pad,
    entries whose source column falls outside [0, w_in) stay zero (this bakes
    the 'same' zero padding along W into the weights).  One conv output row is
        out_row[y] = sum_dy  in_row[y + dy] @ mat[dy].
    """
    cout, cin, k, _ = w.shape
    w_out = w_in + 2 * pad - k + 1
    wnp = np.asarray(w, dtype=np.float32)
    mat = np.zeros((k, w_in * cin, w_out * cout), dtype=np.float32)
    for dy in range(k):
        for dx in range(k):
            blk = wnp[:, :, dy, dx].T                       # (Cin, Cout)
            for x in range(w_out):
                xin = x + dx - pad
                if 0 <= xin < w_in:
                    mat[dy, xin * cin:(xin + 1) * cin,
                        x * cout:(x + 1) * cout] = blk
    return jnp.asarray(mat)


def _convblock_kernel(x_ref, w1_ref, b1_ref, w2_ref, b2_ref, o_ref, mid_ref,
                      *, k: int, pad: int):
    """Fused conv -> ReLU -> conv -> ReLU for a block of images.

    x_ref:   (Bn, H1, W*Cin)       H-padded input, (W, C) fused on lanes
    w1_ref:  (k, W*Cin,  Wm*Cmid)  Toeplitz row-tap slabs (grid-invariant)
    b1_ref:  (1, Wm*Cmid)
    w2_ref:  (k, Wm*Cmid, Wo*Cout)
    b2_ref:  (1, Wo*Cout)
    o_ref:   (Bn, Ho, Wo*Cout)     lane-dense output
    mid_ref: (Hm+2*pad, Wm*Cmid)   f32 VMEM scratch for the intermediate
    """
    f32 = jnp.float32
    bn = x_ref.shape[0]
    Hm = x_ref.shape[1] - k + 1           # conv1 output rows
    Ho = o_ref.shape[1]                   # conv2 output rows
    m_cols = w1_ref.shape[-1]             # Wm * Cmid
    o_cols = o_ref.shape[-1]              # Wo * Cout

    b1 = b1_ref[...].astype(f32)
    b2 = b2_ref[...].astype(f32)

    # Zero only the H-padding border rows of the scratch (interior rows are
    # fully overwritten for every image below).  Done every grid step so the
    # kernel stays correct under megacore grid partitioning.
    if pad:
        zrow = jnp.zeros((pad, m_cols), f32)
        mid_ref[0:pad, :] = zrow
        mid_ref[pad + Hm:pad + Hm + pad, :] = zrow

    for b in range(bn):                   # static unroll over images per step
        # conv1 + bias + ReLU: k row-tap MXU matmuls.
        acc = jnp.zeros((Hm, m_cols), f32)
        for dy in range(k):
            acc += jnp.dot(x_ref[b, dy:dy + Hm, :].astype(f32),
                           w1_ref[dy].astype(f32),
                           preferred_element_type=f32)
        mid = jnp.maximum(acc + b1, 0.0)

        # Stage the intermediate in zero-H-padded VMEM (no HBM round-trip).
        mid_ref[pad:pad + Hm, :] = mid

        # conv2 + bias + ReLU.
        acc2 = jnp.zeros((Ho, o_cols), f32)
        for dy in range(k):
            acc2 += jnp.dot(mid_ref[dy:dy + Ho, :],
                            w2_ref[dy].astype(f32),
                            preferred_element_type=f32)
        o_ref[b] = jnp.maximum(acc2 + b2, 0.0).astype(o_ref.dtype)


class ConvBlock:
    """JAX/Pallas port of the PyTorch ConvBlock (conv-ReLU-conv-ReLU)."""

    def __init__(self, in_channels: int, out_channels: int, kernel_size: int,
                 padding: str = "same", ndim: int = 2, *, key=None):
        if ndim not in (2, 3):
            raise ValueError(
                f"Invalid number of dimensions: ndim={ndim!r}. Options are 2 or 3.")
        if kernel_size % 2 == 0:
            raise ValueError("Only allowing odd kernel sizes.")
        if padding not in ("same", "valid"):
            raise ValueError(f"Invalid padding: {padding!r}")
        if ndim == 3:
            # TODO(synk): 3D (Conv3d) variant not implemented as a Pallas kernel.
            raise NotImplementedError("Only ndim=2 is implemented in Pallas.")

        self.in_channels = in_channels
        self.out_channels = out_channels
        self.kernel_size = kernel_size
        self.padding = padding
        self.ndim = ndim

        if key is None:
            key = jax.random.PRNGKey(0)
        k1, k2, k3, k4 = jax.random.split(key, 4)
        ksz = kernel_size
        fan1 = in_channels * ksz * ksz
        fan2 = out_channels * ksz * ksz
        # Kaiming-normal (ReLU gain), matching torch.nn.init.kaiming_normal_.
        self.w1 = math.sqrt(2.0 / fan1) * jax.random.normal(
            k1, (out_channels, in_channels, ksz, ksz), jnp.float32)
        self.w2 = math.sqrt(2.0 / fan2) * jax.random.normal(
            k2, (out_channels, out_channels, ksz, ksz), jnp.float32)
        # torch Conv2d default bias init: U(-1/sqrt(fan_in), +1/sqrt(fan_in)).
        self.b1 = jax.random.uniform(k3, (out_channels,), jnp.float32,
                                     -1.0 / math.sqrt(fan1), 1.0 / math.sqrt(fan1))
        self.b2 = jax.random.uniform(k4, (out_channels,), jnp.float32,
                                     -1.0 / math.sqrt(fan2), 1.0 / math.sqrt(fan2))

    def __call__(self, x):
        if x.ndim != 4:
            raise ValueError(f"Expected NCHW input, got shape {x.shape}")
        N, Cin, H, W = x.shape
        if Cin != self.in_channels:
            raise ValueError(f"Expected {self.in_channels} input channels, got {Cin}")

        k = self.kernel_size
        p = k // 2 if self.padding == "same" else 0
        Cmid = Cout = self.out_channels

        # Geometry.
        H1 = H + 2 * p                   # H-padded conv1 input rows
        Hm = H1 - k + 1                  # conv1 output rows
        Wm = W + 2 * p - k + 1           # conv1 output cols
        Ho = Hm + 2 * p - k + 1          # conv2 output rows
        Wo = Wm + 2 * p - k + 1          # conv2 output cols

        # NCHW -> NHWC, zero-pad H only (W padding lives in the weight slabs),
        # fuse (W, C) into one contiguous lane-major axis.
        xh = jnp.transpose(x, (0, 2, 3, 1))
        if p:
            xh = jnp.pad(xh, ((0, 0), (p, p), (0, 0), (0, 0)))
        xr = xh.reshape(N, H1, W * Cin)

        w1m = _conv_rowmats(self.w1, W, p)        # (k, W*Cin,   Wm*Cmid)
        w2m = _conv_rowmats(self.w2, Wm, p)       # (k, Wm*Cmid, Wo*Cout)
        b1r = jnp.tile(self.b1, Wm)[None, :]      # (1, Wm*Cmid)
        b2r = jnp.tile(self.b2, Wo)[None, :]      # (1, Wo*Cout)

        # Batch several images per grid step (amortize ~0.35us/step pipeline
        # overhead) while keeping >= 2 grid steps so v7x can use both cores.
        bn = 1
        for cand in (8, 4, 2):
            if N % cand == 0 and N // cand >= 2:
                bn = cand
                break

        out = pl.pallas_call(
            functools.partial(_convblock_kernel, k=k, pad=p),
            out_shape=jax.ShapeDtypeStruct((N, Ho, Wo * Cout), x.dtype),
            grid=(N // bn,),
            in_specs=[
                pl.BlockSpec((bn, H1, W * Cin), lambda n: (n, 0, 0)),
                pl.BlockSpec((k, W * Cin, Wm * Cmid), lambda n: (0, 0, 0)),
                pl.BlockSpec((1, Wm * Cmid), lambda n: (0, 0)),
                pl.BlockSpec((k, Wm * Cmid, Wo * Cout), lambda n: (0, 0, 0)),
                pl.BlockSpec((1, Wo * Cout), lambda n: (0, 0)),
            ],
            out_specs=pl.BlockSpec((bn, Ho, Wo * Cout), lambda n: (n, 0, 0)),
            scratch_shapes=[pltpu.VMEM((Hm + 2 * p, Wm * Cmid), jnp.float32)],
            compiler_params=pltpu.CompilerParams(
                dimension_semantics=("parallel",)),
        )(xr, w1m, b1r, w2m, b2r)

        # (N, Ho, Wo*Cout) -> (N, Cout, Ho, Wo)  (NCHW, matching PyTorch).
        return jnp.transpose(out.reshape(N, Ho, Wo, Cout), (0, 3, 1, 2))


def _ref_convblock(x, w1, b1, w2, b2, padding):
    """Plain-JAX reference (matches torch Conv2d+ReLU twice for odd k, stride 1)."""
    padmode = "SAME" if padding == "same" else "VALID"
    dn = ("NCHW", "OIHW", "NCHW")
    y = lax.conv_general_dilated(x, w1, (1, 1), padmode, dimension_numbers=dn,
                                 precision=lax.Precision.HIGHEST)
    y = jnp.maximum(y + b1[None, :, None, None], 0.0)
    y = lax.conv_general_dilated(y, w2, (1, 1), padmode, dimension_numbers=dn,
                                 precision=lax.Precision.HIGHEST)
    return jnp.maximum(y + b2[None, :, None, None], 0.0)


if __name__ == "__main__":
    key = jax.random.PRNGKey(0)
    kx, kp = jax.random.split(key)

    N, Cin, H, W = 2, 4, 16, 16
    Cout, ksize = 8, 3

    x = jax.random.normal(kx, (N, Cin, H, W), dtype=jnp.float32)
    block = ConvBlock(Cin, Cout, ksize, padding="same", ndim=2, key=kp)

    y = jax.block_until_ready(block(x))

    ref = _ref_convblock(x, block.w1, block.b1, block.w2, block.b2, "same")
    assert y.shape == (N, Cout, H, W), y.shape
    assert y.dtype == x.dtype, y.dtype
    assert jnp.allclose(y, ref, atol=2e-3, rtol=2e-3), (
        float(jnp.max(jnp.abs(y - ref))))

    print("KERNEL_OK")
</pallas_src>

<mosaic_0001>
module attributes {stable_mosaic.version = 11 : i64} {
  func.func @_convblock_kernel(%arg0: i32, %arg1: memref<1x18x64xf32, #tpu.memory_space<vmem>>, %arg2: memref<3x64x128xf32, #tpu.memory_space<vmem>>, %arg3: memref<1x128xf32, #tpu.memory_space<vmem>>, %arg4: memref<3x128x128xf32, #tpu.memory_space<vmem>>, %arg5: memref<1x128xf32, #tpu.memory_space<vmem>>, %arg6: memref<1x16x128xf32, #tpu.memory_space<vmem>>, %arg7: memref<18x128xf32, #tpu.memory_space<vmem>>) attributes {dimension_semantics = [#tpu.dimension_semantics<parallel>], iteration_bounds = array<i64: 2>, scalar_prefetch = 0 : i64, scratch_operands = 1 : i64, tpu.core_type = #tpu.core_type<tc>, window_params = [{transform_indices = @transform_0, window_bounds = array<i64: 1, 18, 64>}, {pipeline_mode = #tpu.pipeline_mode<synchronous>, transform_indices = @transform_1, window_bounds = array<i64: 3, 64, 128>}, {pipeline_mode = #tpu.pipeline_mode<synchronous>, transform_indices = @transform_2, window_bounds = array<i64: 1, 128>}, {pipeline_mode = #tpu.pipeline_mode<synchronous>, transform_indices = @transform_3, window_bounds = array<i64: 3, 128, 128>}, {pipeline_mode = #tpu.pipeline_mode<synchronous>, transform_indices = @transform_4, window_bounds = array<i64: 1, 128>}, {transform_indices = @transform_5, window_bounds = array<i64: 1, 16, 128>}]} {
    %c0 = arith.constant 0 : index
    %c0_0 = arith.constant 0 : index
    %0 = vector.load %arg3[%c0, %c0_0] : memref<1x128xf32, #tpu.memory_space<vmem>>, vector<1x128xf32>
    %c0_1 = arith.constant 0 : index
    %c0_2 = arith.constant 0 : index
    %1 = vector.load %arg5[%c0_1, %c0_2] : memref<1x128xf32, #tpu.memory_space<vmem>>, vector<1x128xf32>
    %cst = arith.constant 0.000000e+00 : f32
    %2 = vector.broadcast %cst : f32 to vector<1x128xf32>
    %c0_3 = arith.constant 0 : index
    %c0_4 = arith.constant 0 : index
    %3 = vector.load %arg7[%c0_3, %c0_4] : memref<18x128xf32, #tpu.memory_space<vmem>>, vector<1x128xf32>
    tpu.vector_store %arg7[%c0_3, %c0_4], %2 {strides = array<i32>} : memref<18x128xf32, #tpu.memory_space<vmem>>, vector<1x128xf32>,
    %c17 = arith.constant 17 : index
    %c0_5 = arith.constant 0 : index
    %4 = vector.load %arg7[%c17, %c0_5] : memref<18x128xf32, #tpu.memory_space<vmem>>, vector<1x128xf32>
    tpu.vector_store %arg7[%c17, %c0_5], %2 {strides = array<i32>} : memref<18x128xf32, #tpu.memory_space<vmem>>, vector<1x128xf32>,
    %cst_6 = arith.constant 0.000000e+00 : f32
    %5 = vector.broadcast %cst_6 : f32 to vector<16x128xf32>
    %c0_7 = arith.constant 0 : index
    %c0_8 = arith.constant 0 : index
    %c0_9 = arith.constant 0 : index
    %6 = vector.load %arg1[%c0_7, %c0_8, %c0_9] : memref<1x18x64xf32, #tpu.memory_space<vmem>>, vector<1x16x64xf32>
    %7 = vector.shape_cast %6 : vector<1x16x64xf32> to vector<16x64xf32>
    %c0_10 = arith.constant 0 : index
    %c0_11 = arith.constant 0 : index
    %c0_12 = arith.constant 0 : index
    %8 = vector.load %arg2[%c0_10, %c0_11, %c0_12] : memref<3x64x128xf32, #tpu.memory_space<vmem>>, vector<1x64x128xf32>
    %9 = vector.shape_cast %8 : vector<1x64x128xf32> to vector<64x128xf32>
    %cst_13 = arith.constant dense<0.000000e+00> : vector<16x128xf32>
    %10 = tpu.matmul %7, %9, %cst_13 {dimension_numbers = #tpu.dot_dimension_numbers<[1], [0], [0], [1], [0, 0, 1, 1], [], []>} : vector<16x64xf32>, vector<64x128xf32>, vector<16x128xf32> -> vector<16x128xf32>
    %11 = arith.addf %5, %10 : vector<16x128xf32>
    %c0_14 = arith.constant 0 : index
    %c1 = arith.constant 1 : index
    %c0_15 = arith.constant 0 : index
    %12 = vector.load %arg1[%c0_14, %c1, %c0_15] : memref<1x18x64xf32, #tpu.memory_space<vmem>>, vector<1x16x64xf32>
    %13 = vector.shape_cast %12 : vector<1x16x64xf32> to vector<16x64xf32>
    %c1_16 = arith.constant 1 : index
    %c0_17 = arith.constant 0 : index
    %c0_18 = arith.constant 0 : index
    %14 = vector.load %arg2[%c1_16, %c0_17, %c0_18] : memref<3x64x128xf32, #tpu.memory_space<vmem>>, vector<1x64x128xf32>
    %15 = vector.shape_cast %14 : vector<1x64x128xf32> to vector<64x128xf32>
    %cst_19 = arith.constant dense<0.000000e+00> : vector<16x128xf32>
    %16 = tpu.matmul %13, %15, %cst_19 {dimension_numbers = #tpu.dot_dimension_numbers<[1], [0], [0], [1], [0, 0, 1, 1], [], []>} : vector<16x64xf32>, vector<64x128xf32>, vector<16x128xf32> -> vector<16x128xf32>
    %17 = arith.addf %11, %16 : vector<16x128xf32>
    %c0_20 = arith.constant 0 : index
    %c2 = arith.constant 2 : index
    %c0_21 = arith.constant 0 : index
    %18 = vector.load %arg1[%c0_20, %c2, %c0_21] : memref<1x18x64xf32, #tpu.memory_space<vmem>>, vector<1x16x64xf32>
    %19 = vector.shape_cast %18 : vector<1x16x64xf32> to vector<16x64xf32>
    %c2_22 = arith.constant 2 : index
    %c0_23 = arith.constant 0 : index
    %c0_24 = arith.constant 0 : index
    %20 = vector.load %arg2[%c2_22, %c0_23, %c0_24] : memref<3x64x128xf32, #tpu.memory_space<vmem>>, vector<1x64x128xf32>
    %21 = vector.shape_cast %20 : vector<1x64x128xf32> to vector<64x128xf32>
    %cst_25 = arith.constant dense<0.000000e+00> : vector<16x128xf32>
    %22 = tpu.matmul %19, %21, %cst_25 {dimension_numbers = #tpu.dot_dimension_numbers<[1], [0], [0], [1], [0, 0, 1, 1], [], []>} : vector<16x64xf32>, vector<64x128xf32>, vector<16x128xf32> -> vector<16x128xf32>
    %23 = arith.addf %17, %22 : vector<16x128xf32>
    %24 = vector.broadcast %0 : vector<1x128xf32> to vector<16x128xf32>
    %25 = arith.addf %23, %24 : vector<16x128xf32>
    %cst_26 = arith.constant 0.000000e+00 : f32
    %26 = vector.broadcast %cst_26 : f32 to vector<16x128xf32>
    %27 = arith.maximumf %25, %26 : vector<16x128xf32>
    %c1_27 = arith.constant 1 : index
    %c0_28 = arith.constant 0 : index
    %28 = vector.load %arg7[%c1_27, %c0_28] : memref<18x128xf32, #tpu.memory_space<vmem>>, vector<16x128xf32>
    tpu.vector_store %arg7[%c1_27, %c0_28], %27 {strides = array<i32>} : memref<18x128xf32, #tpu.memory_space<vmem>>, vector<16x128xf32>,
    %cst_29 = arith.constant 0.000000e+00 : f32
    %29 = vector.broadcast %cst_29 : f32 to vector<16x128xf32>
    %c0_30 = arith.constant 0 : index
    %c0_31 = arith.constant 0 : index
    %30 = vector.load %arg7[%c0_30, %c0_31] : memref<18x128xf32, #tpu.memory_space<vmem>>, vector<16x128xf32>
    %c0_32 = arith.constant 0 : index
    %c0_33 = arith.constant 0 : index
    %c0_34 = arith.constant 0 : index
    %31 = vector.load %arg4[%c0_32, %c0_33, %c0_34] : memref<3x128x128xf32, #tpu.memory_space<vmem>>, vector<1x128x128xf32>
    %32 = vector.shape_cast %31 : vector<1x128x128xf32> to vector<128x128xf32>
    %cst_35 = arith.constant dense<0.000000e+00> : vector<16x128xf32>
    %33 = tpu.matmul %30, %32, %cst_35 {dimension_numbers = #tpu.dot_dimension_numbers<[1], [0], [0], [1], [0, 0, 1, 1], [], []>} : vector<16x128xf32>, vector<128x128xf32>, vector<16x128xf32> -> vector<16x128xf32>
    %34 = arith.addf %29, %33 : vector<16x128xf32>
    %c1_36 = arith.constant 1 : index
    %c0_37 = arith.constant 0 : index
    %35 = vector.load %arg7[%c1_36, %c0_37] : memref<18x128xf32, #tpu.memory_space<vmem>>, vector<16x128xf32>
    %c1_38 = arith.constant 1 : index
    %c0_39 = arith.constant 0 : index
    %c0_40 = arith.constant 0 : index
    %36 = vector.load %arg4[%c1_38, %c0_39, %c0_40] : memref<3x128x128xf32, #tpu.memory_space<vmem>>, vector<1x128x128xf32>
    %37 = vector.shape_cast %36 : vector<1x128x128xf32> to vector<128x128xf32>
    %cst_41 = arith.constant dense<0.000000e+00> : vector<16x128xf32>
    %38 = tpu.matmul %35, %37, %cst_41 {dimension_numbers = #tpu.dot_dimension_numbers<[1], [0], [0], [1], [0, 0, 1, 1], [], []>} : vector<16x128xf32>, vector<128x128xf32>, vector<16x128xf32> -> vector<16x128xf32>
    %39 = arith.addf %34, %38 : vector<16x128xf32>
    %c2_42 = arith.constant 2 : index
    %c0_43 = arith.constant 0 : index
    %40 = vector.load %arg7[%c2_42, %c0_43] : memref<18x128xf32, #tpu.memory_space<vmem>>, vector<16x128xf32>
    %c2_44 = arith.constant 2 : index
    %c0_45 = arith.constant 0 : index
    %c0_46 = arith.constant 0 : index
    %41 = vector.load %arg4[%c2_44, %c0_45, %c0_46] : memref<3x128x128xf32, #tpu.memory_space<vmem>>, vector<1x128x128xf32>
    %42 = vector.shape_cast %41 : vector<1x128x128xf32> to vector<128x128xf32>
    %cst_47 = arith.constant dense<0.000000e+00> : vector<16x128xf32>
    %43 = tpu.matmul %40, %42, %cst_47 {dimension_numbers = #tpu.dot_dimension_numbers<[1], [0], [0], [1], [0, 0, 1, 1], [], []>} : vector<16x128xf32>, vector<128x128xf32>, vector<16x128xf32> -> vector<16x128xf32>
    %44 = arith.addf %39, %43 : vector<16x128xf32>
    %45 = vector.broadcast %1 : vector<1x128xf32> to vector<16x128xf32>
    %46 = arith.addf %44, %45 : vector<16x128xf32>
    %cst_48 = arith.constant 0.000000e+00 : f32
    %47 = vector.broadcast %cst_48 : f32 to vector<16x128xf32>
    %48 = arith.maximumf %46, %47 : vector<16x128xf32>
    %c0_49 = arith.constant 0 : index
    %c0_50 = arith.constant 0 : index
    %c0_51 = arith.constant 0 : index
    %49 = vector.load %arg6[%c0_49, %c0_50, %c0_51] : memref<1x16x128xf32, #tpu.memory_space<vmem>>, vector<1x16x128xf32>
    %50 = vector.shape_cast %49 : vector<1x16x128xf32> to vector<16x128xf32>
    %51 = vector.shape_cast %48 : vector<16x128xf32> to vector<1x16x128xf32>
    tpu.vector_store %arg6[%c0_49, %c0_50, %c0_51], %51 {strides = array<i32>} : memref<1x16x128xf32, #tpu.memory_space<vmem>>, vector<1x16x128xf32>,
    return
  }
  func.func @transform_0(%arg0: i32) -> (i32, i32, i32) {
    %c0_i32 = arith.constant 0 : i32
    %c0_i32_0 = arith.constant 0 : i32
    %c0_i32_1 = arith.constant 0 : i32
    return %arg0, %c0_i32, %c0_i32_0 : i32, i32, i32
  }
  func.func @transform_1(%arg0: i32) -> (i32, i32, i32) {
    %c0_i32 = arith.constant 0 : i32
    %c0_i32_0 = arith.constant 0 : i32
    %c0_i32_1 = arith.constant 0 : i32
    %c0_i32_2 = arith.constant 0 : i32
    return %c0_i32, %c0_i32_0, %c0_i32_1 : i32, i32, i32
  }
  func.func @transform_2(%arg0: i32) -> (i32, i32) {
    %c0_i32 = arith.constant 0 : i32
    %c0_i32_0 = arith.constant 0 : i32
    %c0_i32_1 = arith.constant 0 : i32
    return %c0_i32, %c0_i32_0 : i32, i32
  }
  func.func @transform_3(%arg0: i32) -> (i32, i32, i32) {
    %c0_i32 = arith.constant 0 : i32
    %c0_i32_0 = arith.constant 0 : i32
    %c0_i32_1 = arith.constant 0 : i32
    %c0_i32_2 = arith.constant 0 : i32
    return %c0_i32, %c0_i32_0, %c0_i32_1 : i32, i32, i32
  }
  func.func @transform_4(%arg0: i32) -> (i32, i32) {
    %c0_i32 = arith.constant 0 : i32
    %c0_i32_0 = arith.constant 0 : i32
    %c0_i32_1 = arith.constant 0 : i32
    return %c0_i32, %c0_i32_0 : i32, i32
  }
  func.func @transform_5(%arg0: i32) -> (i32, i32, i32) {
    %c0_i32 = arith.constant 0 : i32
    %c0_i32_0 = arith.constant 0 : i32
    %c0_i32_1 = arith.constant 0 : i32
    return %arg0, %c0_i32, %c0_i32_0 : i32, i32, i32
  }
}

</mosaic_0001>

<llo_original>
// kernel: tpu_custom_call.1
$region0: #{tpu_custom_call.1}
  #allocation0 [shape = 'u32[]', space=smem, size = 0x4, offset = 0x4, fixed_abs, tag = 'smem constant byte address 0x4 - core index']
  #allocation1 [shape = 'u32[72,128]{1,0:T(1,128)}', space=vmem, size = 0x9000, scoped, tag = 'internal scratch']
  #allocation2 [shape = 'f32[18,128]{1,0:T(8,128)}', space=vmem, size = 0x3000, scoped, tag = 'scratch operand']
  %s0 = inlined_call_operand.vmem [shape: f32[2,18,64], index: 0, kind: input, shape index: {}]
  %s1 = inlined_call_operand.hbm [shape: f32[3,64,128], index: 1, kind: input, shape index: {}]
  %s2 = inlined_call_operand.vmem [shape: f32[1,128], index: 2, kind: input, shape index: {}]
  %s3 = inlined_call_operand.hbm [shape: f32[3,128,128], index: 3, kind: input, shape index: {}]
  %s4 = inlined_call_operand.vmem [shape: f32[1,128], index: 4, kind: input, shape index: {}]
  %s5 = inlined_call_operand.hbm [shape: f32[2,16,128], index: 5, kind: output, shape index: {}]
  %s6 = sld [smem:[#allocation0]]
  $region61: #{tpu_custom_call.1} parent=0
    _
  %s8 = ssub.s32 1, %s6
  %s9 = scalar_select 0, %s8, %s6
  $region1: #{tpu_custom_call.1} parent=0
    #allocation3 [shape = 'u8[98304]{0}', space=vmem, size = 0x18000, scoped, tag = 'input window, operand 1, single buffered']
    #allocation4 [shape = 's32[2]{0}', space=sflag, size = 0x8, scoped, tag = 'scoped memory for tpu_custom_call.1']
    #allocation5 [shape = 's32[2]{0}', space=sflag, size = 0x8, scoped, tag = 'scoped memory for tpu_custom_call.1']
    #allocation6 [shape = 'u8[196608]{0}', space=vmem, size = 0x30000, scoped, tag = 'input window, operand 3, single buffered']
    #allocation7 [shape = 's32[1]{0}', space=sflag, size = 0x4, scoped, tag = 'scoped memory for tpu_custom_call.1']
    #allocation8 [shape = 'u8[16384]{0}', space=vmem, size = 0x4000, scoped, tag = 'output window, operand 0']
    %10 = vsyncpa [#allocation4], 0
    %11 = vsyncpa [#allocation7], 0
    %12 = vsyncpa [#allocation5], 0
    %s13 = scalar_lea.sflag [#allocation5], 1
    %14 = vsyncpa %s13, 0
    loop: start=0, step=1, limit=4
    $region2: #{tpu_custom_call.1} parent=1 // loop_pre_header
      _
    $region3: #{tpu_custom_call.1} parent=1 // loop_header
      %s16 = sphi 0, %s20
      %p17 = scmp.ge.s32.totalorder %s16, 4
      %s26 = sphi 0, %s28
      %s29 = sphi 0, %s26
      %s30 = sphi 0, %s29
      %s46 = sphi 0, %s30
      %s50 = sphi 0, %s50
      %s52 = sphi 0, %s50
      %s53 = sphi 0, %s52
      %s67 = sphi 0, %s53
      %s71 = sphi 0, %s71
      %s73 = sphi 0, %s71
      %s74 = sphi 0, %s73
      %s88 = sphi 0, %s74
      %s92 = sphi 0, %s92
      %s94 = sphi 0, %s92
      %s95 = sphi 0, %s94
      %s109 = sphi 0, %s95
      %s113 = sphi 0, %s113
      %s115 = sphi 0, %s113
      %s116 = sphi 0, %s115
      %s130 = sphi 0, %s116
      %s136 = sphi 0, %s138
      %s139 = sphi 0, %s136
      %s140 = sphi 0, %s139
      %s156 = sphi 0, %s140
    $region4: #{tpu_custom_call.1} parent=1 // loop_header_branch
      %19 = sbr.rel (%p17) target = $region8
    $region5: #{tpu_custom_call.1} parent=1 // loop_body
      %s21 = ssub.s32 %s16, 1
      %s22 = ssub.s32 %s16, 2
      %s23 = sadd.s32 %s16, 1
      %s24 = ssub.s32 %s16, %s23
      %p25 = scmp.eq.s32.totalorder %s24, 0
      %s27 = sadd.s32 %s26, 1
      %s28 = scalar_select %p25, %s26, %s27
      %p31 = pneg %p25
      %p32 = scmp.eq.s32.totalorder %s16, 1
      %p33 = por %p31, %p32
      %p34 = scmp.ne.s32.totalorder %s26, %s29
      %p35 = scmp.eq.s32.totalorder %s16, 0
      %p36 = por %p34, %p35
      %p37 = scmp.ne.s32.totalorder %s26, %s29
      %p38 = scmp.eq.s32.totalorder %s21, 1
      %p39 = por %p37, %p38
      %p40 = scmp.ne.s32.totalorder %s29, %s30
      %p41 = scmp.eq.s32.totalorder %s21, 0
      %p42 = por %p40, %p41
      %p43 = scmp.ne.s32.totalorder %s29, %s30
      %p44 = scmp.eq.s32.totalorder %s22, 1
      %p45 = por %p43, %p44
      %p47 = scmp.ne.s32.totalorder %s30, %s46
      %p48 = scmp.eq.s32.totalorder %s22, 0
      %p49 = por %p47, %p48
      %s51 = sadd.s32 %s50, 1
      %p54 = scmp.eq.s32.totalorder %s16, 1
      %p55 = scmp.ne.s32.totalorder %s50, %s52
      %p56 = scmp.eq.s32.totalorder %s16, 0
      %p57 = por %p55, %p56
      %p58 = scmp.ne.s32.totalorder %s50, %s52
      %p59 = scmp.eq.s32.totalorder %s21, 1
      %p60 = por %p58, %p59
      %p61 = scmp.ne.s32.totalorder %s52, %s53
      %p62 = scmp.eq.s32.totalorder %s21, 0
      %p63 = por %p61, %p62
      %p64 = scmp.ne.s32.totalorder %s52, %s53
      %p65 = scmp.eq.s32.totalorder %s22, 1
      %p66 = por %p64, %p65
      %p68 = scmp.ne.s32.totalorder %s53, %s67
      %p69 = scmp.eq.s32.totalorder %s22, 0
      %p70 = por %p68, %p69
      %s72 = sadd.s32 %s71, 1
      %p75 = scmp.eq.s32.totalorder %s16, 1
      %p76 = scmp.ne.s32.totalorder %s71, %s73
      %p77 = scmp.eq.s32.totalorder %s16, 0
      %p78 = por %p76, %p77
      %p79 = scmp.ne.s32.totalorder %s71, %s73
      %p80 = scmp.eq.s32.totalorder %s21, 1
      %p81 = por %p79, %p80
      %p82 = scmp.ne.s32.totalorder %s73, %s74
      %p83 = scmp.eq.s32.totalorder %s21, 0
      %p84 = por %p82, %p83
      %p85 = scmp.ne.s32.totalorder %s73, %s74
      %p86 = scmp.eq.s32.totalorder %s22, 1
      %p87 = por %p85, %p86
      %p89 = scmp.ne.s32.totalorder %s74, %s88
      %p90 = scmp.eq.s32.totalorder %s22, 0
      %p91 = por %p89, %p90
      %s93 = sadd.s32 %s92, 1
      %p96 = scmp.eq.s32.totalorder %s16, 1
      %p97 = scmp.ne.s32.totalorder %s92, %s94
      %p98 = scmp.eq.s32.totalorder %s16, 0
      %p99 = por %p97, %p98
      %p100 = scmp.ne.s32.totalorder %s92, %s94
      %p101 = scmp.eq.s32.totalorder %s21, 1
      %p102 = por %p100, %p101
      %p103 = scmp.ne.s32.totalorder %s94, %s95
      %p104 = scmp.eq.s32.totalorder %s21, 0
      %p105 = por %p103, %p104
      %p106 = scmp.ne.s32.totalorder %s94, %s95
      %p107 = scmp.eq.s32.totalorder %s22, 1
      %p108 = por %p106, %p107
      %p110 = scmp.ne.s32.totalorder %s95, %s109
      %p111 = scmp.eq.s32.totalorder %s22, 0
      %p112 = por %p110, %p111
      %s114 = sadd.s32 %s113, 1
      %p117 = scmp.eq.s32.totalorder %s16, 1
      %p118 = scmp.ne.s32.totalorder %s113, %s115
      %p119 = scmp.eq.s32.totalorder %s16, 0
      %p120 = por %p118, %p119
      %p121 = scmp.ne.s32.totalorder %s113, %s115
      %p122 = scmp.eq.s32.totalorder %s21, 1
      %p123 = por %p121, %p122
      %p124 = scmp.ne.s32.totalorder %s115, %s116
      %p125 = scmp.eq.s32.totalorder %s21, 0
      %p126 = por %p124, %p125
      %p127 = scmp.ne.s32.totalorder %s115, %s116
      %p128 = scmp.eq.s32.totalorder %s22, 1
      %p129 = por %p127, %p128
      %p131 = scmp.ne.s32.totalorder %s116, %s130
      %p132 = scmp.eq.s32.totalorder %s22, 0
      %p133 = por %p131, %p132
      %s134 = ssub.s32 %s16, %s23
      %p135 = scmp.eq.s32.totalorder %s134, 0
      %s137 = sadd.s32 %s136, 1
      %s138 = scalar_select %p135, %s136, %s137
      %p141 = pneg %p135
      %p142 = scmp.eq.s32.totalorder %s16, 1
      %p143 = por %p141, %p142
      %p144 = scmp.ne.s32.totalorder %s136, %s139
      %p145 = scmp.eq.s32.totalorder %s16, 0
      %p146 = por %p144, %p145
      %p147 = scmp.ne.s32.totalorder %s136, %s139
      %p148 = scmp.eq.s32.totalorder %s21, 1
      %p149 = por %p147, %p148
      %p150 = scmp.ne.s32.totalorder %s139, %s140
      %p151 = scmp.eq.s32.totalorder %s21, 0
      %p152 = por %p150, %p151
      %p153 = scmp.ne.s32.totalorder %s139, %s140
      %p154 = scmp.eq.s32.totalorder %s22, 1
      %p155 = por %p153, %p154
      %p157 = scmp.ne.s32.totalorder %s140, %s156
      %p158 = scmp.eq.s32.totalorder %s22, 0
      %p159 = por %p157, %p158
      %p160 = scmp.le.s32.totalorder 1, %s16
      %p161 = scmp.lt.s32.totalorder %s16, 3
      %p162 = pnand %p160, %p161
      %p163 = pneg %p162
      // Predicated region
      $region9: #{tpu_custom_call.1} parent=5 // pred_check
        _
      $region10: #{tpu_custom_call.1} parent=5 // pred_check_branch
        %165 = sbr.rel (%p162) target = $region12
      $region11: #{tpu_custom_call.1} parent=5 // pred_region
        %s166 = ssub.s32 %s16, 1
        // Predicated region
        $region13: #{tpu_custom_call.1} parent=11 // pred_check
          %p167 = pneg %p63
        $region14: #{tpu_custom_call.1} parent=11 // pred_check_branch
          %169 = sbr.rel (%p167) target = $region16
        $region15: #{tpu_custom_call.1} parent=11 // pred_region
          %171 = vsyncadd [#allocation4], 0
          %s172 = sshll.u32 %s1, 4
          %s173 = int_to_ptr.hbm [resolvable:$true] %s172
          %s174 = sshll.u32 [#allocation3], 4
          %s175 = int_to_ptr.vmem [resolvable:$true] %s174
          %180 = dma.hbm_to_vmem [thread:$0]  %s173, 3072, %s175, [#allocation4], 128, 128, 8
        $region16: #{tpu_custom_call.1} parent=11 // pred_fallthru
          _
        // Predicated region
        $region17: #{tpu_custom_call.1} parent=11 // pred_check
          %p181 = pneg %p84
        $region18: #{tpu_custom_call.1} parent=11 // pred_check_branch
          %183 = sbr.rel (%p181) target = $region20
        $region19: #{tpu_custom_call.1} parent=11 // pred_region
          _
        $region20: #{tpu_custom_call.1} parent=11 // pred_fallthru
          _
        // Predicated region
        $region21: #{tpu_custom_call.1} parent=11 // pred_check
          %p184 = pneg %p105
        $region22: #{tpu_custom_call.1} parent=11 // pred_check_branch
          %186 = sbr.rel (%p184) target = $region24
        $region23: #{tpu_custom_call.1} parent=11 // pred_region
          %188 = vsyncadd [#allocation7], 0
          %s189 = sshll.u32 %s3, 4
          %s190 = int_to_ptr.hbm [resolvable:$true] %s189
          %s191 = sshll.u32 [#allocation6], 4
          %s192 = int_to_ptr.vmem [resolvable:$true] %s191
          %197 = dma.hbm_to_vmem [thread:$0]  %s190, 6144, %s192, [#allocation7], 128, 128, 8
        $region24: #{tpu_custom_call.1} parent=11 // pred_fallthru
          _
        // Predicated region
        $region25: #{tpu_custom_call.1} parent=11 // pred_check
          %p198 = pneg %p126
        $region26: #{tpu_custom_call.1} parent=11 // pred_check_branch
          %200 = sbr.rel (%p198) target = $region28
        $region27: #{tpu_custom_call.1} parent=11 // pred_region
          _
        $region28: #{tpu_custom_call.1} parent=11 // pred_fallthru
          _
      $region12: #{tpu_custom_call.1} parent=5 // pred_fallthru
        _
      %p201 = scmp.lt.s32.totalorder %s16, 2
      // Predicated region
      $region29: #{tpu_custom_call.1} parent=5 // pred_check
        %p202 = pneg %p201
      $region30: #{tpu_custom_call.1} parent=5 // pred_check_branch
        %204 = sbr.rel (%p202) target = $region32
      $region31: #{tpu_custom_call.1} parent=5 // pred_region
        // Predicated region
        $region33: #{tpu_custom_call.1} parent=31 // pred_check
          %p205 = pneg %p36
        $region34: #{tpu_custom_call.1} parent=31 // pred_check_branch
          %207 = sbr.rel (%p205) target = $region36
        $region35: #{tpu_custom_call.1} parent=31 // pred_region
          %p208 = scmp.lt.s32.totalorder %s16, 1
          %s209 = scalar_select %p208, %s16, 1
          %s210 = smul.addr %s209, 3
          %s211 = smul.addr %s210, 8
          %s212 = scalar_lea.vmem %s0, %s211
        $region36: #{tpu_custom_call.1} parent=31 // pred_fallthru
          _
      $region32: #{tpu_custom_call.1} parent=5 // pred_fallthru
        _
      %p213 = scmp.le.s32.totalorder 1, %s16
      %p214 = scmp.lt.s32.totalorder %s16, 3
      %p215 = pnand %p213, %p214
      %p216 = pneg %p215
      // Predicated region
      $region37: #{tpu_custom_call.1} parent=5 // pred_check
        _
      $region38: #{tpu_custom_call.1} parent=5 // pred_check_branch
        %218 = sbr.rel (%p215) target = $region40
      $region39: #{tpu_custom_call.1} parent=5 // pred_region
        %s219 = ssub.s32 %s16, 1
        // Predicated region
        $region41: #{tpu_custom_call.1} parent=39 // pred_check
          %p220 = pneg %p63
        $region42: #{tpu_custom_call.1} parent=39 // pred_check_branch
          %222 = sbr.rel (%p220) target = $region44
        $region43: #{tpu_custom_call.1} parent=39 // pred_region
          %224 = dma.done [#allocation4], 3072
        $region44: #{tpu_custom_call.1} parent=39 // pred_fallthru
          _
        // Predicated region
        $region45: #{tpu_custom_call.1} parent=39 // pred_check
          %p225 = pneg %p105
        $region46: #{tpu_custom_call.1} parent=39 // pred_check_branch
          %227 = sbr.rel (%p225) target = $region48
        $region47: #{tpu_custom_call.1} parent=39 // pred_region
          %229 = dma.done [#allocation7], 6144
        $region48: #{tpu_custom_call.1} parent=39 // pred_fallthru
          _
        %p230 = scmp.lt.s32.totalorder %s21, 1
        %s231 = scalar_select %p230, %s21, 1
        %s232 = smul.addr %s231, 3
        %s233 = smul.addr %s232, 8
        %s234 = scalar_lea.vmem %s0, %s233
        %p235 = pneg %p42
        %p236 = pneg %p39
        %p237 = pneg %p63
        %p238 = pneg %p60
        %p239 = pneg %p84
        %p240 = pneg %p81
        %p241 = pneg %p105
        %p242 = pneg %p102
        %p243 = pneg %p126
        %p244 = pneg %p123
        %p245 = pneg %p152
        %p246 = pneg %p149
        %s247 = sand.u32 %s139, 1
        %s248 = scalar_lea.sflag [#allocation5], %s247
        %s249 = sand.u32 %s139, 1
        %s250 = smul.addr %s249, 16
        %s251 = scalar_lea.vmem [#allocation8], %s250
        %p252 = scmp.lt.s32.totalorder %s21, 1
        %s253 = scalar_select %p252, %s21, 1
        %s254 = smul.addr %s253, 3
        %s255 = smul.addr %s254, 8
        %s256 = scalar_lea.vmem %s0, %s255
        %v257 = vld [vmem:[%s2] sm:$0x1]
        %v258 = vld [vmem:[%s4] sm:$0x1]
        %259 = vst [vmem:[#allocation2] sm:$0x1] 0.0
        %260 = vst [vmem:[#allocation2 + $0x11] sm:$0x1] 0.0
        %v261 = vld [vmem:[%s256] sm:$0xff]
        %v262 = vld [vmem:[%s256 + $0x8] sm:$0xff]
        %v263 = vld [vmem:[#allocation3] sm:$0xff]
        %v264 = vld [vmem:[#allocation3 + $0x8] sm:$0xff]
        %v265 = vld [vmem:[#allocation3 + $0x10] sm:$0xff]
        %v266 = vld [vmem:[#allocation3 + $0x18] sm:$0xff]
        %v267 = vld [vmem:[#allocation3 + $0x20] sm:$0xff]
        %v268 = vld [vmem:[#allocation3 + $0x28] sm:$0xff]
        %v269 = vld [vmem:[#allocation3 + $0x30] sm:$0xff]
        %v270 = vld [vmem:[#allocation3 + $0x38] sm:$0xff]
        %v271 = vld [vmem:[%s256 + $0x1] sm:$0xff]
        %v272 = vld [vmem:[%s256 + $0x9] sm:$0xff]
        %s273 = scalar_lea.vmem [#allocation3], 64
        %v274 = vld [vmem:[%s273] sm:$0xff]
        %v275 = vld [vmem:[%s273 + $0x8] sm:$0xff]
        %v276 = vld [vmem:[%s273 + $0x10] sm:$0xff]
        %v277 = vld [vmem:[%s273 + $0x18] sm:$0xff]
        %v278 = vld [vmem:[%s273 + $0x20] sm:$0xff]
        %v279 = vld [vmem:[%s273 + $0x28] sm:$0xff]
        %v280 = vld [vmem:[%s273 + $0x30] sm:$0xff]
        %v281 = vld [vmem:[%s273 + $0x38] sm:$0xff]
        %vm282 = vcmask 523264
        %v284 = vsel %vm282, %v271, 0
        %v287 = vsel %vm282, %v272, 0
        %289 = vmatpush.msra.mxu0 0.0
        %290 = vmatpush.msra.mxu0 0.0
        %291 = vmatpush.msra.mxu0 0.0
        %292 = vmatpush.msra.mxu0 0.0
        %293 = vmatpush.msra.mxu0 0.0
        %294 = vmatpush.msra.mxu0 0.0
        %295 = vmatpush.msra.mxu0 0.0
        %296 = vmatpush.msra.mxu0 0.0
        %297 = vmatpush.msra.mxu0 %v281
        %298 = vmatpush.msra.mxu0 %v280
        %299 = vmatpush.msra.mxu0 %v279
        %300 = vmatpush.msra.mxu0 %v278
        %301 = vmatpush.msra.mxu0 %v277
        %302 = vmatpush.msra.mxu0 %v276
        %303 = vmatpush.msra.mxu0 %v275
        %304 = vmatpush.msra.mxu0 %v274
        %305 = vmatmul.f32.gmra.mxu0 %v284
        %v306 = vpop.f32.mrf.mxu0
        %v307 = vadd.f32 0.0, %v306
        %308 = vmatmul.f32.gmra.mxu0 %v287
        %v309 = vpop.f32.mrf.mxu0
        %v310 = vadd.f32 0.0, %v309
        %311 = vdwg.mxu0
        %v313 = vsel %vm282, %v261, 0
        %v316 = vsel %vm282, %v262, 0
        %318 = vmatpush.msra.mxu0 0.0
        %319 = vmatpush.msra.mxu0 0.0
        %320 = vmatpush.msra.mxu0 0.0
        %321 = vmatpush.msra.mxu0 0.0
        %322 = vmatpush.msra.mxu0 0.0
        %323 = vmatpush.msra.mxu0 0.0
        %324 = vmatpush.msra.mxu0 0.0
        %325 = vmatpush.msra.mxu0 0.0
        %326 = vmatpush.msra.mxu0 %v270
        %327 = vmatpush.msra.mxu0 %v269
        %328 = vmatpush.msra.mxu0 %v268
        %329 = vmatpush.msra.mxu0 %v267
        %330 = vmatpush.msra.mxu0 %v266
        %331 = vmatpush.msra.mxu0 %v265
        %332 = vmatpush.msra.mxu0 %v264
        %333 = vmatpush.msra.mxu0 %v263
        %334 = vmatmul.f32.gmra.mxu0 %v313
        %v335 = vpop.f32.mrf.mxu0
        %v336 = vadd.f32 %v307, %v335
        %337 = vmatmul.f32.gmra.mxu0 %v316
        %v338 = vpop.f32.mrf.mxu0
        %v339 = vadd.f32 %v310, %v338
        %340 = vdwg.mxu0
        %v341 = vld [vmem:[%s256 + $0x2] sm:$0xff]
        %v342 = vld [vmem:[%s256 + $0xa] sm:$0xff]
        %s343 = scalar_lea.vmem [#allocation3], 128
        %v344 = vld [vmem:[%s343] sm:$0xff]
        %v345 = vld [vmem:[%s343 + $0x8] sm:$0xff]
        %v346 = vld [vmem:[%s343 + $0x10] sm:$0xff]
        %v347 = vld [vmem:[%s343 + $0x18] sm:$0xff]
        %v348 = vld [vmem:[%s343 + $0x20] sm:$0xff]
        %v349 = vld [vmem:[%s343 + $0x28] sm:$0xff]
        %v350 = vld [vmem:[%s343 + $0x30] sm:$0xff]
        %v351 = vld [vmem:[%s343 + $0x38] sm:$0xff]
        %v353 = vsel %vm282, %v341, 0
        %v356 = vsel %vm282, %v342, 0
        %358 = vmatpush.msra.mxu0 0.0
        %359 = vmatpush.msra.mxu0 0.0
        %360 = vmatpush.msra.mxu0 0.0
        %361 = vmatpush.msra.mxu0 0.0
        %362 = vmatpush.msra.mxu0 0.0
        %363 = vmatpush.msra.mxu0 0.0
        %364 = vmatpush.msra.mxu0 0.0
        %365 = vmatpush.msra.mxu0 0.0
        %366 = vmatpush.msra.mxu0 %v351
        %367 = vmatpush.msra.mxu0 %v350
        %368 = vmatpush.msra.mxu0 %v349
        %369 = vmatpush.msra.mxu0 %v348
        %370 = vmatpush.msra.mxu0 %v347
        %371 = vmatpush.msra.mxu0 %v346
        %372 = vmatpush.msra.mxu0 %v345
        %373 = vmatpush.msra.mxu0 %v344
        %374 = vmatmul.f32.gmra.mxu0 %v353
        %v375 = vpop.f32.mrf.mxu0
        %v376 = vadd.f32 0.0, %v375
        %377 = vmatmul.f32.gmra.mxu0 %v356
        %v378 = vpop.f32.mrf.mxu0
        %v379 = vadd.f32 0.0, %v378
        %380 = vdwg.mxu0
        %v381 = vadd.f32 %v336, %v376
        %v382 = vadd.f32 %v339, %v379
        %v384 = vperm.slane %v257, 0
        %v386 = vadd.f32 %v381, %v384
        %v387 = vadd.f32 %v382, %v384
        %v388 = vmax.f32 %v386, 0.0
        %v389 = vmax.f32 %v387, 0.0
        %390 = vst [vmem:[#allocation2 + $0x1] sm:$0xff] %v388
        %391 = vst [vmem:[#allocation2 + $0x9] sm:$0xff] %v389
        %v392 = vld [vmem:[#allocation2] sm:$0xff]
        %v393 = vld [vmem:[#allocation2 + $0x8] sm:$0xff]
        %v394 = vld [vmem:[#allocation6] sm:$0xff]
        %v395 = vld [vmem:[#allocation6 + $0x8] sm:$0xff]
        %v396 = vld [vmem:[#allocation6 + $0x10] sm:$0xff]
        %v397 = vld [vmem:[#allocation6 + $0x18] sm:$0xff]
        %v398 = vld [vmem:[#allocation6 + $0x20] sm:$0xff]
        %v399 = vld [vmem:[#allocation6 + $0x28] sm:$0xff]
        %v400 = vld [vmem:[#allocation6 + $0x30] sm:$0xff]
        %v401 = vld [vmem:[#allocation6 + $0x38] sm:$0xff]
        %v402 = vld [vmem:[#allocation6 + $0x40] sm:$0xff]
        %v403 = vld [vmem:[#allocation6 + $0x48] sm:$0xff]
        %v404 = vld [vmem:[#allocation6 + $0x50] sm:$0xff]
        %v405 = vld [vmem:[#allocation6 + $0x58] sm:$0xff]
        %v406 = vld [vmem:[#allocation6 + $0x60] sm:$0xff]
        %v407 = vld [vmem:[#allocation6 + $0x68] sm:$0xff]
        %v408 = vld [vmem:[#allocation6 + $0x70] sm:$0xff]
        %v409 = vld [vmem:[#allocation6 + $0x78] sm:$0xff]
        %v410 = vld [vmem:[#allocation2 + $0x1] sm:$0xff]
        %v411 = vld [vmem:[#allocation2 + $0x9] sm:$0xff]
        %s412 = scalar_lea.vmem [#allocation6], 128
        %v413 = vld [vmem:[%s412] sm:$0xff]
        %v414 = vld [vmem:[%s412 + $0x8] sm:$0xff]
        %v415 = vld [vmem:[%s412 + $0x10] sm:$0xff]
        %v416 = vld [vmem:[%s412 + $0x18] sm:$0xff]
        %v417 = vld [vmem:[%s412 + $0x20] sm:$0xff]
        %v418 = vld [vmem:[%s412 + $0x28] sm:$0xff]
        %v419 = vld [vmem:[%s412 + $0x30] sm:$0xff]
        %v420 = vld [vmem:[%s412 + $0x38] sm:$0xff]
        %v421 = vld [vmem:[%s412 + $0x40] sm:$0xff]
        %v422 = vld [vmem:[%s412 + $0x48] sm:$0xff]
        %v423 = vld [vmem:[%s412 + $0x50] sm:$0xff]
        %v424 = vld [vmem:[%s412 + $0x58] sm:$0xff]
        %v425 = vld [vmem:[%s412 + $0x60] sm:$0xff]
        %v426 = vld [vmem:[%s412 + $0x68] sm:$0xff]
        %v427 = vld [vmem:[%s412 + $0x70] sm:$0xff]
        %v428 = vld [vmem:[%s412 + $0x78] sm:$0xff]
        %429 = vmatpush.msra.mxu0 %v428
        %430 = vmatpush.msra.mxu0 %v427
        %431 = vmatpush.msra.mxu0 %v426
        %432 = vmatpush.msra.mxu0 %v425
        %433 = vmatpush.msra.mxu0 %v424
        %434 = vmatpush.msra.mxu0 %v423
        %435 = vmatpush.msra.mxu0 %v422
        %436 = vmatpush.msra.mxu0 %v421
        %437 = vmatpush.msra.mxu0 %v420
        %438 = vmatpush.msra.mxu0 %v419
        %439 = vmatpush.msra.mxu0 %v418
        %440 = vmatpush.msra.mxu0 %v417
        %441 = vmatpush.msra.mxu0 %v416
        %442 = vmatpush.msra.mxu0 %v415
        %443 = vmatpush.msra.mxu0 %v414
        %444 = vmatpush.msra.mxu0 %v413
        %445 = vmatmul.f32.gmra.mxu0 %v410
        %v446 = vpop.f32.mrf.mxu0
        %v447 = vadd.f32 0.0, %v446
        %448 = vmatmul.f32.gmra.mxu0 %v411
        %v449 = vpop.f32.mrf.mxu0
        %v450 = vadd.f32 0.0, %v449
        %451 = vdwg.mxu0
        %452 = vmatpush.msra.mxu0 %v409
        %453 = vmatpush.msra.mxu0 %v408
        %454 = vmatpush.msra.mxu0 %v407
        %455 = vmatpush.msra.mxu0 %v406
        %456 = vmatpush.msra.mxu0 %v405
        %457 = vmatpush.msra.mxu0 %v404
        %458 = vmatpush.msra.mxu0 %v403
        %459 = vmatpush.msra.mxu0 %v402
        %460 = vmatpush.msra.mxu0 %v401
        %461 = vmatpush.msra.mxu0 %v400
        %462 = vmatpush.msra.mxu0 %v399
        %463 = vmatpush.msra.mxu0 %v398
        %464 = vmatpush.msra.mxu0 %v397
        %465 = vmatpush.msra.mxu0 %v396
        %466 = vmatpush.msra.mxu0 %v395
        %467 = vmatpush.msra.mxu0 %v394
        %468 = vmatmul.f32.gmra.mxu0 %v392
        %v469 = vpop.f32.mrf.mxu0
        %v470 = vadd.f32 %v447, %v469
        %471 = vmatmul.f32.gmra.mxu0 %v393
        %v472 = vpop.f32.mrf.mxu0
        %v473 = vadd.f32 %v450, %v472
        %474 = vdwg.mxu0
        %v475 = vld [vmem:[#allocation2 + $0x2] sm:$0xff]
        %v476 = vld [vmem:[#allocation2 + $0xa] sm:$0xff]
        %s477 = scalar_lea.vmem [#allocation6], 256
        %v478 = vld [vmem:[%s477] sm:$0xff]
        %v479 = vld [vmem:[%s477 + $0x8] sm:$0xff]
        %v480 = vld [vmem:[%s477 + $0x10] sm:$0xff]
        %v481 = vld [vmem:[%s477 + $0x18] sm:$0xff]
        %v482 = vld [vmem:[%s477 + $0x20] sm:$0xff]
        %v483 = vld [vmem:[%s477 + $0x28] sm:$0xff]
        %v484 = vld [vmem:[%s477 + $0x30] sm:$0xff]
        %v485 = vld [vmem:[%s477 + $0x38] sm:$0xff]
        %v486 = vld [vmem:[%s477 + $0x40] sm:$0xff]
        %v487 = vld [vmem:[%s477 + $0x48] sm:$0xff]
        %v488 = vld [vmem:[%s477 + $0x50] sm:$0xff]
        %v489 = vld [vmem:[%s477 + $0x58] sm:$0xff]
        %v490 = vld [vmem:[%s477 + $0x60] sm:$0xff]
        %v491 = vld [vmem:[%s477 + $0x68] sm:$0xff]
        %v492 = vld [vmem:[%s477 + $0x70] sm:$0xff]
        %v493 = vld [vmem:[%s477 + $0x78] sm:$0xff]
        %494 = vmatpush.msra.mxu0 %v493
        %495 = vmatpush.msra.mxu0 %v492
        %496 = vmatpush.msra.mxu0 %v491
        %497 = vmatpush.msra.mxu0 %v490
        %498 = vmatpush.msra.mxu0 %v489
        %499 = vmatpush.msra.mxu0 %v488
        %500 = vmatpush.msra.mxu0 %v487
        %501 = vmatpush.msra.mxu0 %v486
        %502 = vmatpush.msra.mxu0 %v485
        %503 = vmatpush.msra.mxu0 %v484
        %504 = vmatpush.msra.mxu0 %v483
        %505 = vmatpush.msra.mxu0 %v482
        %506 = vmatpush.msra.mxu0 %v481
        %507 = vmatpush.msra.mxu0 %v480
        %508 = vmatpush.msra.mxu0 %v479
        %509 = vmatpush.msra.mxu0 %v478
        %510 = vmatmul.f32.gmra.mxu0 %v475
        %v511 = vpop.f32.mrf.mxu0
        %v512 = vadd.f32 0.0, %v511
        %513 = vmatmul.f32.gmra.mxu0 %v476
        %v514 = vpop.f32.mrf.mxu0
        %v515 = vadd.f32 0.0, %v514
        %516 = vdwg.mxu0
        %v517 = vadd.f32 %v470, %v512
        %v518 = vadd.f32 %v473, %v515
        %v520 = vperm.slane %v258, 0
        %v522 = vadd.f32 %v517, %v520
        %v523 = vadd.f32 %v518, %v520
        %v524 = vmax.f32 %v522, 0.0
        %v525 = vmax.f32 %v523, 0.0
        %526 = vst [vmem:[%s251] sm:$0xff] %v524
        %527 = vst [vmem:[%s251 + $0x8] sm:$0xff] %v525
        %s528 = sand.u32 %s139, 1
        %s529 = scalar_lea.sflag [#allocation5], %s528
        %s530 = sand.u32 %s139, 1
        %s531 = smul.addr %s530, 16
        %s532 = scalar_lea.vmem [#allocation8], %s531
        // Predicated region
        $region49: #{tpu_custom_call.1} parent=39 // pred_check
          %p533 = pneg %p149
        $region50: #{tpu_custom_call.1} parent=39 // pred_check_branch
          %535 = sbr.rel (%p533) target = $region52
        $region51: #{tpu_custom_call.1} parent=39 // pred_region
          %537 = vsyncadd %s529, 0
          %s538 = smul.addr %s21, 2
          %s539 = smul.addr %s538, 8
          %s540 = scalar_lea.hbm %s5, %s539
          %s541 = sshll.u32 %s532, 4
          %s542 = int_to_ptr.vmem [resolvable:$true] %s541
          %s543 = sshll.u32 %s540, 4
          %s544 = int_to_ptr.hbm [resolvable:$true] %s543
          %549 = dma.vmem_to_hbm [thread:$0]  %s542, 256, %s544, %s529, 128, 128, 8
        $region52: #{tpu_custom_call.1} parent=39 // pred_fallthru
          _
      $region40: #{tpu_custom_call.1} parent=5 // pred_fallthru
        _
      %p550 = scmp.le.s32.totalorder 2, %s16
      // Predicated region
      $region53: #{tpu_custom_call.1} parent=5 // pred_check
        %p551 = pneg %p550
      $region54: #{tpu_custom_call.1} parent=5 // pred_check_branch
        %553 = sbr.rel (%p551) target = $region56
      $region55: #{tpu_custom_call.1} parent=5 // pred_region
        %s554 = ssub.s32 %s16, 2
        // Predicated region
        $region57: #{tpu_custom_call.1} parent=55 // pred_check
          %p555 = pneg %p155
        $region58: #{tpu_custom_call.1} parent=55 // pred_check_branch
          %557 = sbr.rel (%p555) target = $region60
        $region59: #{tpu_custom_call.1} parent=55 // pred_region
          %s558 = sand.u32 %s140, 1
          %s559 = scalar_lea.sflag [#allocation5], %s558
          %s560 = sand.u32 %s140, 1
          %s561 = smul.addr %s560, 16
          %s562 = scalar_lea.vmem [#allocation8], %s561
          %564 = dma.done %s559, 256
        $region60: #{tpu_custom_call.1} parent=55 // pred_fallthru
          _
      $region56: #{tpu_custom_call.1} parent=5 // pred_fallthru
        _
    $region6: #{tpu_custom_call.1} parent=1 // loop_footer
      %s20 = sadd.s32 1, %s16
    $region7: #{tpu_custom_call.1} parent=1 // loop_footer_branch
      %15 = sbr.rel target = $region3
    $region8: #{tpu_custom_call.1} parent=1 // loop_exit
      _
    %565 = vsyncpa [#allocation4], 1
    %s566 = scalar_lea.sflag [#allocation4], 1
    %567 = vsyncpa %s566, 1
    %568 = vsyncpa [#allocation7], 1
    %569 = vsyncpa [#allocation5], 1
    %s570 = scalar_lea.sflag [#allocation5], 1
    %571 = vsyncpa %s570, 1

</llo_original>
